<compile_context>
chip_gen: v7x
topology: tpu7x:2x2x1
jax: 0.10.0
libtpu: 0.0.40
codegen_flags: <defaults>
</compile_context>

<pallas_src>
import jax
import jax.numpy as jnp
from jax import lax
from jax.experimental import pallas as pl
from jax.experimental.pallas import tpu as pltpu

ALPHA = 0.25
GAMMA = 2.0           # gamma == 2 -> implemented as a square (exact, avoids pow)
WEIGHTS = (1.0, 1.0)  # module default weights=[1, 1]; forward uses weights[1] for BOTH terms

_LANE = 128
_SUBLANE = 8
_NEG_PAD = -1e9       # pad logit value: with target 0 its focal contribution is exactly 0


def _focal_sum(x, t):
    """Sum of BCEFocalLoss elements (alpha=0.25, gamma=2.0), numerically stable.

    Reuses e = exp(-|x|) for both sigmoid and the log1p term; divide -> EUP reciprocal.
    """
    e = jnp.exp(-jnp.abs(x))
    inv_1pe = pl.reciprocal(1.0 + e, approx=True)
    probs = jnp.where(x >= 0, 1.0, e) * inv_1pe                  # sigmoid(x)
    # stable BCE-with-logits: max(x, 0) - x*t + log(1 + exp(-|x|))
    bce = jnp.maximum(x, 0.0) - x * t + jnp.log1p(e)
    p_t = probs * t + (1.0 - probs) * (1.0 - t)
    alpha_factor = t * ALPHA + (1.0 - t) * (1.0 - ALPHA)
    one_minus_pt = 1.0 - p_t
    loss = alpha_factor * (one_minus_pt * one_minus_pt) * bce    # (1 - p_t) ** 2.0
    return jnp.sum(loss)


def _bce_focal_2way_kernel(logit_ref, seg_ref, target_ref, out_ref, segmax_ref):
    t_idx = pl.program_id(1)
    n_t = pl.num_programs(1)

    # Running max over the segment (T) axis, kept in VMEM scratch across the T sweep.
    @pl.when(t_idx == 0)
    def _():
        segmax_ref[...] = jnp.full(segmax_ref.shape, -jnp.inf, segmax_ref.dtype)

    segmax_ref[...] = jnp.maximum(segmax_ref[...], jnp.max(seg_ref[...], axis=1))

    # Final T step: single fused focal pass over [logits ; seg_max], emit partial sum.
    @pl.when(t_idx == n_t - 1)
    def _():
        tgt = target_ref[...]
        x = jnp.concatenate([logit_ref[...], segmax_ref[...]], axis=0)   # (2*Bt, Cp)
        tt = jnp.concatenate([tgt, tgt], axis=0)
        partial = _focal_sum(x, tt)

        # Lane-dense (1, 8, 128) output block; partial sum lives in element [0, 0, 0].
        sub = lax.broadcasted_iota(jnp.int32, out_ref.shape, 1)
        lane = lax.broadcasted_iota(jnp.int32, out_ref.shape, 2)
        out_ref[...] = jnp.where((sub == 0) & (lane == 0), partial, 0.0)


def bce_focal_2way_loss(logits, seg_logits, targets, *, b_tile=8, seg_tile_bytes=2 << 20):
    """weights[1]*focal(logits, t).mean() + weights[1]*focal(seg.max(1), t).mean()."""
    logits = logits.astype(jnp.float32)
    seg_logits = seg_logits.astype(jnp.float32)
    targets = targets.astype(jnp.float32)   # target.float() in the torch forward

    B, C = logits.shape
    _, T, _ = seg_logits.shape

    # Lane-dense class axis, sublane-aligned batch tile, T tile sized to ~seg_tile_bytes.
    c_pad = pl.cdiv(C, _LANE) * _LANE
    b_tile = max(_SUBLANE, (b_tile // _SUBLANE) * _SUBLANE)
    b_pad = pl.cdiv(B, b_tile) * b_tile

    bytes_per_t = b_tile * c_pad * 4
    t_tile = max(_SUBLANE, (seg_tile_bytes // bytes_per_t) // _SUBLANE * _SUBLANE)
    t_tile = min(t_tile, pl.cdiv(T, _SUBLANE) * _SUBLANE)
    t_pad = pl.cdiv(T, t_tile) * t_tile

    n_b = b_pad // b_tile
    n_t = t_pad // t_tile

    # Padding: -1e9 for logits/seg (focal contribution exactly 0 with target 0), 0 targets.
    logits_p = jnp.full((b_pad, c_pad), _NEG_PAD, jnp.float32).at[:B, :C].set(logits)
    seg_p = jnp.full((b_pad, t_pad, c_pad), _NEG_PAD, jnp.float32).at[:B, :T, :C].set(seg_logits)
    targets_p = jnp.zeros((b_pad, c_pad), jnp.float32).at[:B, :C].set(targets)

    partials = pl.pallas_call(
        _bce_focal_2way_kernel,
        out_shape=jax.ShapeDtypeStruct((n_b, _SUBLANE, _LANE), jnp.float32),
        grid_spec=pltpu.PrefetchScalarGridSpec(
            num_scalar_prefetch=0,
            grid=(n_b, n_t),
            in_specs=[
                pl.BlockSpec((b_tile, c_pad), lambda i, t: (i, 0)),
                pl.BlockSpec((b_tile, t_tile, c_pad), lambda i, t: (i, t, 0)),
                pl.BlockSpec((b_tile, c_pad), lambda i, t: (i, 0)),
            ],
            out_specs=pl.BlockSpec((1, _SUBLANE, _LANE), lambda i, t: (i, 0, 0)),
            scratch_shapes=[pltpu.VMEM((b_tile, c_pad), jnp.float32)],
        ),
        compiler_params=pltpu.CompilerParams(
            dimension_semantics=("parallel", "arbitrary"),
            vmem_limit_bytes=32 * 1024 * 1024,
        ),
    )(logits_p, seg_p, targets_p)

    # Both terms use weights[1] (module quirk); each mean is over B*C real elements.
    scale = WEIGHTS[1] / float(B * C)
    return jnp.sum(partials) * scale


def _reference(logits, seg_logits, targets):
    """Plain-JAX reference matching the torch module."""
    def focal_mean(x, t):
        probs = jax.nn.sigmoid(x)
        bce = jnp.maximum(x, 0.0) - x * t + jnp.log1p(jnp.exp(-jnp.abs(x)))
        p_t = probs * t + (1.0 - probs) * (1.0 - t)
        alpha_factor = t * ALPHA + (1.0 - t) * (1.0 - ALPHA)
        modulating = (1.0 - p_t) ** GAMMA
        return jnp.mean(alpha_factor * modulating * bce)

    seg_max = jnp.max(seg_logits, axis=1)
    return WEIGHTS[1] * focal_mean(logits, targets) + WEIGHTS[1] * focal_mean(seg_max, targets)


if __name__ == "__main__":
    B, T, C = 4, 8, 16   # batch, segments (time frames), classes

    key = jax.random.PRNGKey(0)
    k1, k2, k3 = jax.random.split(key, 3)

    logits = jax.random.normal(k1, (B, C), dtype=jnp.float32) * 2.0
    seg_logits = jax.random.normal(k2, (B, T, C), dtype=jnp.float32) * 2.0
    targets = (jax.random.uniform(k3, (B, C)) > 0.7).astype(jnp.float32)  # multi-hot labels

    loss = bce_focal_2way_loss(logits, seg_logits, targets)
    jax.block_until_ready(loss)

    ref = _reference(logits, seg_logits, targets)
    # approx reciprocal inside the kernel -> slightly relaxed tolerance
    assert jnp.allclose(loss, ref, rtol=2e-3, atol=1e-5), (loss, ref)

    print("KERNEL_OK")
</pallas_src>

<mosaic_0001>
module attributes {stable_mosaic.version = 11 : i64} {
  func.func @_bce_focal_2way_kernel(%arg0: i32, %arg1: i32, %arg2: memref<8x128xf32, #tpu.memory_space<vmem>>, %arg3: memref<8x8x128xf32, #tpu.memory_space<vmem>>, %arg4: memref<8x128xf32, #tpu.memory_space<vmem>>, %arg5: memref<1x8x128xf32, #tpu.memory_space<vmem>>, %arg6: memref<8x128xf32, #tpu.memory_space<vmem>>) attributes {dimension_semantics = [#tpu.dimension_semantics<parallel>, #tpu.dimension_semantics<arbitrary>], iteration_bounds = array<i64: 1, 1>, scalar_prefetch = 0 : i64, scratch_operands = 1 : i64, tpu.core_type = #tpu.core_type<tc>, window_params = [{transform_indices = @transform_0, window_bounds = array<i64: 8, 128>}, {transform_indices = @transform_1, window_bounds = array<i64: 8, 8, 128>}, {transform_indices = @transform_2, window_bounds = array<i64: 8, 128>}, {transform_indices = @transform_3, window_bounds = array<i64: 1, 8, 128>}]} {
    %c0_i32 = arith.constant 0 : i32
    %0 = arith.cmpi eq, %arg1, %c0_i32 : i32
    %1 = arith.extui %0 : i1 to i32
    %c0_i32_0 = arith.constant 0 : i32
    %2 = arith.cmpi ne, %1, %c0_i32_0 : i32
    scf.if %2 {
      %cst_9 = arith.constant 0xFF800000 : f32
      %11 = vector.broadcast %cst_9 : f32 to vector<8x128xf32>
      %c0_10 = arith.constant 0 : index
      %c0_11 = arith.constant 0 : index
      %12 = vector.load %arg6[%c0_10, %c0_11] : memref<8x128xf32, #tpu.memory_space<vmem>>, vector<8x128xf32>
      tpu.vector_store %arg6[%c0_10, %c0_11], %11 {strides = array<i32>} : memref<8x128xf32, #tpu.memory_space<vmem>>, vector<8x128xf32>,
    } else {
    }
    %c0 = arith.constant 0 : index
    %c0_1 = arith.constant 0 : index
    %3 = vector.load %arg6[%c0, %c0_1] : memref<8x128xf32, #tpu.memory_space<vmem>>, vector<8x128xf32>
    %c0_2 = arith.constant 0 : index
    %c0_3 = arith.constant 0 : index
    %c0_4 = arith.constant 0 : index
    %4 = vector.load %arg3[%c0_2, %c0_3, %c0_4] : memref<8x8x128xf32, #tpu.memory_space<vmem>>, vector<8x8x128xf32>
    %cst = arith.constant dense<0xFF800000> : vector<8x128xf32>
    %5 = vector.multi_reduction <maximumf>, %4, %cst [1] : vector<8x8x128xf32> to vector<8x128xf32>
    %6 = arith.maximumf %3, %5 : vector<8x128xf32>
    %c0_5 = arith.constant 0 : index
    %c0_6 = arith.constant 0 : index
    %7 = vector.load %arg6[%c0_5, %c0_6] : memref<8x128xf32, #tpu.memory_space<vmem>>, vector<8x128xf32>
    tpu.vector_store %arg6[%c0_5, %c0_6], %6 {strides = array<i32>} : memref<8x128xf32, #tpu.memory_space<vmem>>, vector<8x128xf32>,
    %c0_i32_7 = arith.constant 0 : i32
    %8 = arith.cmpi eq, %arg1, %c0_i32_7 : i32
    %9 = arith.extui %8 : i1 to i32
    %c0_i32_8 = arith.constant 0 : i32
    %10 = arith.cmpi ne, %9, %c0_i32_8 : i32
    scf.if %10 {
      %c0_9 = arith.constant 0 : index
      %c0_10 = arith.constant 0 : index
      %11 = vector.load %arg4[%c0_9, %c0_10] : memref<8x128xf32, #tpu.memory_space<vmem>>, vector<8x128xf32>
      %c0_11 = arith.constant 0 : index
      %c0_12 = arith.constant 0 : index
      %12 = vector.load %arg2[%c0_11, %c0_12] : memref<8x128xf32, #tpu.memory_space<vmem>>, vector<8x128xf32>
      %c0_13 = arith.constant 0 : index
      %c0_14 = arith.constant 0 : index
      %13 = vector.load %arg6[%c0_13, %c0_14] : memref<8x128xf32, #tpu.memory_space<vmem>>, vector<8x128xf32>
      %14 = tpu.concatenate %12, %13 in 0 : vector<8x128xf32>, vector<8x128xf32> -> vector<16x128xf32>
      %15 = tpu.concatenate %11, %11 in 0 : vector<8x128xf32>, vector<8x128xf32> -> vector<16x128xf32>
      %16 = math.absf %14 : vector<16x128xf32>
      %cst_15 = arith.constant 0.000000e+00 : f32
      %17 = vector.broadcast %cst_15 : f32 to vector<16x128xf32>
      %18 = arith.subf %17, %16 : vector<16x128xf32>
      %19 = math.exp %18 : vector<16x128xf32>
      %cst_16 = arith.constant 1.000000e+00 : f32
      %20 = vector.broadcast %cst_16 : f32 to vector<16x128xf32>
      %21 = arith.addf %20, %19 : vector<16x128xf32>
      %22 = tpu.reciprocal %21 {approx = true} : vector<16x128xf32> -> vector<16x128xf32>
      %cst_17 = arith.constant 0.000000e+00 : f32
      %23 = vector.broadcast %cst_17 : f32 to vector<16x128xf32>
      %24 = arith.cmpf oge, %14, %23 : vector<16x128xf32>
      %cst_18 = arith.constant 1.000000e+00 : f32
      %25 = vector.broadcast %cst_18 : f32 to vector<16x128xf32>
      %26 = arith.select %24, %25, %19 : vector<16x128xi1>, vector<16x128xf32>
      %27 = arith.mulf %26, %22 : vector<16x128xf32>
      %cst_19 = arith.constant 0.000000e+00 : f32
      %28 = vector.broadcast %cst_19 : f32 to vector<16x128xf32>
      %29 = arith.maximumf %14, %28 : vector<16x128xf32>
      %30 = arith.mulf %14, %15 : vector<16x128xf32>
      %31 = arith.subf %29, %30 : vector<16x128xf32>
      %32 = math.log1p %19 : vector<16x128xf32>
      %33 = arith.addf %31, %32 : vector<16x128xf32>
      %34 = arith.mulf %27, %15 : vector<16x128xf32>
      %cst_20 = arith.constant 1.000000e+00 : f32
      %35 = vector.broadcast %cst_20 : f32 to vector<16x128xf32>
      %36 = arith.subf %35, %27 : vector<16x128xf32>
      %cst_21 = arith.constant 1.000000e+00 : f32
      %37 = vector.broadcast %cst_21 : f32 to vector<16x128xf32>
      %38 = arith.subf %37, %15 : vector<16x128xf32>
      %39 = arith.mulf %36, %38 : vector<16x128xf32>
      %40 = arith.addf %34, %39 : vector<16x128xf32>
      %cst_22 = arith.constant 2.500000e-01 : f32
      %41 = vector.broadcast %cst_22 : f32 to vector<16x128xf32>
      %42 = arith.mulf %15, %41 : vector<16x128xf32>
      %cst_23 = arith.constant 1.000000e+00 : f32
      %43 = vector.broadcast %cst_23 : f32 to vector<16x128xf32>
      %44 = arith.subf %43, %15 : vector<16x128xf32>
      %cst_24 = arith.constant 7.500000e-01 : f32
      %45 = vector.broadcast %cst_24 : f32 to vector<16x128xf32>
      %46 = arith.mulf %44, %45 : vector<16x128xf32>
      %47 = arith.addf %42, %46 : vector<16x128xf32>
      %cst_25 = arith.constant 1.000000e+00 : f32
      %48 = vector.broadcast %cst_25 : f32 to vector<16x128xf32>
      %49 = arith.subf %48, %40 : vector<16x128xf32>
      %50 = arith.mulf %49, %49 : vector<16x128xf32>
      %51 = arith.mulf %47, %50 : vector<16x128xf32>
      %52 = arith.mulf %51, %33 : vector<16x128xf32>
      %53 = vector.shape_cast %52 : vector<16x128xf32> to vector<1x16x128xf32>
      %cst_26 = arith.constant dense<0.000000e+00> : vector<1xf32>
      %54 = vector.multi_reduction <add>, %53, %cst_26 [1, 2] : vector<1x16x128xf32> to vector<1xf32>
      %55 = vector.shape_cast %54 : vector<1xf32> to vector<1x1x1xf32>
      %56 = vector.extract %55[0, 0, 0] : f32 from vector<1x1x1xf32>
      %57 = tpu.iota {dimensions = array<i32: 1>} : vector<1x8x128xi32>
      %58 = tpu.iota {dimensions = array<i32: 2>} : vector<1x8x128xi32>
      %c0_i32_27 = arith.constant 0 : i32
      %59 = vector.broadcast %c0_i32_27 : i32 to vector<1x8x128xi32>
      %60 = arith.cmpi eq, %57, %59 : vector<1x8x128xi32>
      %c0_i32_28 = arith.constant 0 : i32
      %61 = vector.broadcast %c0_i32_28 : i32 to vector<1x8x128xi32>
      %62 = arith.cmpi eq, %58, %61 : vector<1x8x128xi32>
      %63 = arith.andi %60, %62 : vector<1x8x128xi1>
      %cst_29 = arith.constant 0.000000e+00 : f32
      %64 = vector.broadcast %56 : f32 to vector<1x8x128xf32>
      %65 = vector.broadcast %cst_29 : f32 to vector<1x8x128xf32>
      %66 = arith.select %63, %64, %65 : vector<1x8x128xi1>, vector<1x8x128xf32>
      %c0_30 = arith.constant 0 : index
      %c0_31 = arith.constant 0 : index
      %c0_32 = arith.constant 0 : index
      %67 = vector.load %arg5[%c0_30, %c0_31, %c0_32] : memref<1x8x128xf32, #tpu.memory_space<vmem>>, vector<1x8x128xf32>
      tpu.vector_store %arg5[%c0_30, %c0_31, %c0_32], %66 {strides = array<i32>} : memref<1x8x128xf32, #tpu.memory_space<vmem>>, vector<1x8x128xf32>,
    } else {
    }
    return
  }
  func.func @transform_0(%arg0: i32, %arg1: i32) -> (i32, i32) {
    %c0_i32 = arith.constant 0 : i32
    %c0_i32_0 = arith.constant 0 : i32
    return %arg0, %c0_i32 : i32, i32
  }
  func.func @transform_1(%arg0: i32, %arg1: i32) -> (i32, i32, i32) {
    %c0_i32 = arith.constant 0 : i32
    %c0_i32_0 = arith.constant 0 : i32
    return %arg0, %arg1, %c0_i32 : i32, i32, i32
  }
  func.func @transform_2(%arg0: i32, %arg1: i32) -> (i32, i32) {
    %c0_i32 = arith.constant 0 : i32
    %c0_i32_0 = arith.constant 0 : i32
    return %arg0, %c0_i32 : i32, i32
  }
  func.func @transform_3(%arg0: i32, %arg1: i32) -> (i32, i32, i32) {
    %c0_i32 = arith.constant 0 : i32
    %c0_i32_0 = arith.constant 0 : i32
    %c0_i32_1 = arith.constant 0 : i32
    return %arg0, %c0_i32, %c0_i32_0 : i32, i32, i32
  }
}

</mosaic_0001>

<llo_original>
// kernel: tpu_custom_call.1
$region0: #{tpu_custom_call.1}
  #allocation0 [shape = 'u32[]', space=smem, size = 0x4, offset = 0x4, fixed_abs, tag = 'smem constant byte address 0x4 - core index']
  #allocation1 [shape = 'u32[144,128]{1,0:T(1,128)}', space=vmem, size = 0x12000, scoped, tag = 'internal scratch']
  #allocation2 [shape = 'f32[8,128]{1,0:T(8,128)}', space=vmem, size = 0x1000, scoped, tag = 'scratch operand']
  %s0 = inlined_call_operand.hbm [shape: f32[8,128], index: 0, kind: input, shape index: {}]
  %s1 = inlined_call_operand.hbm [shape: f32[8,8,128], index: 1, kind: input, shape index: {}]
  %s2 = inlined_call_operand.hbm [shape: f32[8,128], index: 2, kind: input, shape index: {}]
  %s3 = inlined_call_operand.hbm [shape: f32[1,8,128], index: 3, kind: output, shape index: {}]
  %s4 = sld [smem:[#allocation0]]
  $region42: #{tpu_custom_call.1} parent=0
    _
  %s6 = ssub.s32 1, %s4
  %s7 = scalar_select 0, %s6, %s4
  $region1: #{tpu_custom_call.1} parent=0
    #allocation3 [shape = 'u8[4096]{0}', space=vmem, size = 0x1000, scoped, tag = 'input window, operand 0, single buffered']
    #allocation4 [shape = 's32[1]{0}', space=sflag, size = 0x4, scoped, tag = 'scoped memory for tpu_custom_call.1']
    #allocation5 [shape = 's32[1]{0}', space=sflag, size = 0x4, scoped, tag = 'scoped memory for tpu_custom_call.1']
    #allocation6 [shape = 'u8[32768]{0}', space=vmem, size = 0x8000, scoped, tag = 'input window, operand 1, single buffered']
    #allocation7 [shape = 's32[1]{0}', space=sflag, size = 0x4, scoped, tag = 'scoped memory for tpu_custom_call.1']
    #allocation8 [shape = 'u8[4096]{0}', space=vmem, size = 0x1000, scoped, tag = 'input window, operand 2, single buffered']
    #allocation9 [shape = 'u8[4096]{0}', space=vmem, size = 0x1000, scoped, tag = 'output window, operand 0, single buffered']
    %8 = vsyncpa [#allocation4], 0
    %9 = vsyncpa [#allocation7], 0
    %10 = vsyncpa [#allocation5], 0
    // Predicated region
    $region2: #{tpu_custom_call.1} parent=1 // pred_check
      _
    $region3: #{tpu_custom_call.1} parent=1 // pred_check_branch
      %12 = sbr.rel (0) target = $region5
    $region4: #{tpu_custom_call.1} parent=1 // pred_region
      %s14 = ssub.s32 128, 128
      %15 = vsyncadd [#allocation4], %s14
      %s17 = sshll.u32 [#allocation3], 4
      %s18 = int_to_ptr.vmem [resolvable:$true] %s17
      %20 = dma.hbm_to_vmem [thread:$0]  %s0, 128, %s18, [#allocation4]
    $region5: #{tpu_custom_call.1} parent=1 // pred_fallthru
      _
    // Predicated region
    $region6: #{tpu_custom_call.1} parent=1 // pred_check
      _
    $region7: #{tpu_custom_call.1} parent=1 // pred_check_branch
      %22 = sbr.rel (0) target = $region9
    $region8: #{tpu_custom_call.1} parent=1 // pred_region
      %s24 = ssub.s32 1024, 1024
      %25 = vsyncadd [#allocation7], %s24
      %s26 = sshll.u32 [#allocation6], 4
      %s27 = int_to_ptr.vmem [resolvable:$true] %s26
      %32 = dma.hbm_to_vmem [thread:$0]  %s1, 1024, %s27, [#allocation7], 128, 128, 8
    $region9: #{tpu_custom_call.1} parent=1 // pred_fallthru
      _
    // Predicated region
    $region10: #{tpu_custom_call.1} parent=1 // pred_check
      _
    $region11: #{tpu_custom_call.1} parent=1 // pred_check_branch
      %34 = sbr.rel (0) target = $region13
    $region12: #{tpu_custom_call.1} parent=1 // pred_region
      %s36 = ssub.s32 128, 128
      %37 = vsyncadd [#allocation7], %s36
      %s39 = sshll.u32 [#allocation8], 4
      %s40 = int_to_ptr.vmem [resolvable:$true] %s39
      %42 = dma.hbm_to_vmem [thread:$0]  %s2, 128, %s40, [#allocation7]
    $region13: #{tpu_custom_call.1} parent=1 // pred_fallthru
      _
    // Predicated region
    $region14: #{tpu_custom_call.1} parent=1 // pred_check
      _
    $region15: #{tpu_custom_call.1} parent=1 // pred_check_branch
      %44 = sbr.rel (0) target = $region17
    $region16: #{tpu_custom_call.1} parent=1 // pred_region
      %45 = dma.done [#allocation4], 128
    $region17: #{tpu_custom_call.1} parent=1 // pred_fallthru
      _
    // Predicated region
    $region18: #{tpu_custom_call.1} parent=1 // pred_check
      _
    $region19: #{tpu_custom_call.1} parent=1 // pred_check_branch
      %47 = sbr.rel (0) target = $region21
    $region20: #{tpu_custom_call.1} parent=1 // pred_region
      %48 = dma.done [#allocation7], 1024
    $region21: #{tpu_custom_call.1} parent=1 // pred_fallthru
      _
    // Predicated region
    $region22: #{tpu_custom_call.1} parent=1 // pred_check
      _
    $region23: #{tpu_custom_call.1} parent=1 // pred_check_branch
      %50 = sbr.rel (0) target = $region25
    $region24: #{tpu_custom_call.1} parent=1 // pred_region
      %51 = dma.done [#allocation7], 128
    $region25: #{tpu_custom_call.1} parent=1 // pred_fallthru
      _
    %p52 = scmp.eq.s32.totalorder 0, 0
    // Predicated region
    $region26: #{tpu_custom_call.1} parent=1 // pred_check
      %p53 = pneg %p52
    $region27: #{tpu_custom_call.1} parent=1 // pred_check_branch
      %55 = sbr.rel (%p53) target = $region29
    $region28: #{tpu_custom_call.1} parent=1 // pred_region
      %56 = vst [vmem:[#allocation2] sm:$0xff] -inf
    $region29: #{tpu_custom_call.1} parent=1 // pred_fallthru
      _
    %v57 = vld [vmem:[#allocation2] sm:$0xff]
    %v58 = vld [vmem:[#allocation6] sm:$0xff]
    %v59 = vld [vmem:[#allocation6 + $0x8] sm:$0xff]
    %v60 = vld [vmem:[#allocation6 + $0x10] sm:$0xff]
    %v61 = vld [vmem:[#allocation6 + $0x18] sm:$0xff]
    %v62 = vld [vmem:[#allocation6 + $0x20] sm:$0xff]
    %v63 = vld [vmem:[#allocation6 + $0x28] sm:$0xff]
    %v64 = vld [vmem:[#allocation6 + $0x30] sm:$0xff]
    %v65 = vld [vmem:[#allocation6 + $0x38] sm:$0xff]
    %v66 = vrot.slane %v58, 4
    %v67 = vmax.f32 %v58, %v66
    %v68 = vrot.slane %v67, 2
    %v69 = vmax.f32 %v67, %v68
    %v70 = vrot.slane %v69, 1
    %v71 = vmax.f32 %v69, %v70
    %v72 = vrot.slane %v59, 4
    %v73 = vmax.f32 %v59, %v72
    %v74 = vrot.slane %v73, 2
    %v75 = vmax.f32 %v73, %v74
    %v76 = vrot.slane %v75, 1
    %v77 = vmax.f32 %v75, %v76
    %v78 = vrot.slane %v60, 4
    %v79 = vmax.f32 %v60, %v78
    %v80 = vrot.slane %v79, 2
    %v81 = vmax.f32 %v79, %v80
    %v82 = vrot.slane %v81, 1
    %v83 = vmax.f32 %v81, %v82
    %v84 = vrot.slane %v61, 4
    %v85 = vmax.f32 %v61, %v84
    %v86 = vrot.slane %v85, 2
    %v87 = vmax.f32 %v85, %v86
    %v88 = vrot.slane %v87, 1
    %v89 = vmax.f32 %v87, %v88
    %v90 = vrot.slane %v62, 4
    %v91 = vmax.f32 %v62, %v90
    %v92 = vrot.slane %v91, 2
    %v93 = vmax.f32 %v91, %v92
    %v94 = vrot.slane %v93, 1
    %v95 = vmax.f32 %v93, %v94
    %v96 = vrot.slane %v63, 4
    %v97 = vmax.f32 %v63, %v96
    %v98 = vrot.slane %v97, 2
    %v99 = vmax.f32 %v97, %v98
    %v100 = vrot.slane %v99, 1
    %v101 = vmax.f32 %v99, %v100
    %v102 = vrot.slane %v64, 4
    %v103 = vmax.f32 %v64, %v102
    %v104 = vrot.slane %v103, 2
    %v105 = vmax.f32 %v103, %v104
    %v106 = vrot.slane %v105, 1
    %v107 = vmax.f32 %v105, %v106
    %v108 = vrot.slane %v65, 4
    %v109 = vmax.f32 %v65, %v108
    %v110 = vrot.slane %v109, 2
    %v111 = vmax.f32 %v109, %v110
    %v112 = vrot.slane %v111, 1
    %v113 = vmax.f32 %v111, %v112
    %vm122 = vcmask 1041409
    %v123 = vsel %vm122, %v77, %v71
    %vm124 = vcmask 1042434
    %v125 = vsel %vm124, %v83, %v123
    %vm126 = vcmask 1043459
    %v127 = vsel %vm126, %v89, %v125
    %vm128 = vcmask 1044484
    %v129 = vsel %vm128, %v95, %v127
    %vm130 = vcmask 1045509
    %v131 = vsel %vm130, %v101, %v129
    %vm132 = vcmask 1046534
    %v133 = vsel %vm132, %v107, %v131
    %vm134 = vcmask 1047559
    %v135 = vsel %vm134, %v113, %v133
    %v137 = vmax.f32 %v57, %v135
    %138 = vst [vmem:[#allocation2] sm:$0xff] %v137
    // Predicated region
    $region30: #{tpu_custom_call.1} parent=1 // pred_check
      %p139 = pneg %p52
    $region31: #{tpu_custom_call.1} parent=1 // pred_check_branch
      %141 = sbr.rel (%p139) target = $region33
    $region32: #{tpu_custom_call.1} parent=1 // pred_region
      %v142 = vld [vmem:[#allocation8] sm:$0xff]
      %v143 = vld [vmem:[#allocation3] sm:$0xff]
      %v144 = vld [vmem:[#allocation2] sm:$0xff]
      %v145 = vand.u32 2147483647, %v143
      %v146 = vand.u32 2147483647, %v144
      %v147 = vsub.f32 0.0, %v145
      %v148 = vsub.f32 0.0, %v146
      %v149 = vmul.f32 %v147, 1.442695
      %v150 = vpow.pop %v149
      %v151 = vmul.f32 %v148, 1.442695
      %v152 = vpow.pop %v151
      %v153 = vadd.f32 %v150, 1.0
      %v154 = vadd.f32 %v152, 1.0
      %v155 = vrcp.pop %v153
      %v156 = vrcp.pop %v154
      %vm157 = vcmp.ge.f32.partialorder %v143, 0.0
      %vm158 = vcmp.ge.f32.partialorder %v144, 0.0
      %v159 = vsel %vm157, 1.0, %v150
      %v160 = vsel %vm158, 1.0, %v152
      %v161 = vmul.f32 %v159, %v155
      %v162 = vmul.f32 %v160, %v156
      %v163 = vmax.f32 %v143, 0.0
      %v164 = vmax.f32 %v144, 0.0
      %v165 = vmul.f32 %v143, %v142
      %v166 = vmul.f32 %v144, %v142
      %v167 = vsub.f32 %v163, %v165
      %v168 = vsub.f32 %v164, %v166
      %v169 = vadd.f32 %v150, 1.0
      %v170 = vlog2.pop %v169
      %v171 = vmul.f32 %v170, 0.6931472
      %v172 = vmul.f32 -0.5, %v150
      %v173 = vadd.f32 %v172, 1.0
      %v174 = vmul.f32 %v173, %v150
      %v175 = vand.u32 2147483647, %v150
      %vm176 = vcmp.lt.f32.partialorder %v175, 0.0004427343
      %v177 = vsel %vm176, %v174, %v171
      %v178 = vadd.f32 %v152, 1.0
      %v179 = vlog2.pop %v178
      %v180 = vmul.f32 %v179, 0.6931472
      %v181 = vmul.f32 -0.5, %v152
      %v182 = vadd.f32 %v181, 1.0
      %v183 = vmul.f32 %v182, %v152
      %v184 = vand.u32 2147483647, %v152
      %vm185 = vcmp.lt.f32.partialorder %v184, 0.0004427343
      %v186 = vsel %vm185, %v183, %v180
      %v187 = vadd.f32 %v167, %v177
      %v188 = vadd.f32 %v168, %v186
      %v189 = vmul.f32 %v161, %v142
      %v190 = vmul.f32 %v162, %v142
      %v191 = vsub.f32 1.0, %v161
      %v192 = vsub.f32 1.0, %v162
      %v193 = vsub.f32 1.0, %v142
      %v194 = vmul.f32 %v191, %v193
      %v195 = vmul.f32 %v192, %v193
      %v196 = vadd.f32 %v189, %v194
      %v197 = vadd.f32 %v190, %v195
      %v198 = vmul.f32 %v142, 0.25
      %v199 = vmul.f32 %v193, 0.75
      %v200 = vadd.f32 %v198, %v199
      %v201 = vsub.f32 1.0, %v196
      %v202 = vsub.f32 1.0, %v197
      %v203 = vmul.f32 %v201, %v201
      %v204 = vmul.f32 %v202, %v202
      %v205 = vmul.f32 %v200, %v203
      %v206 = vmul.f32 %v200, %v204
      %v207 = vmul.f32 %v205, %v187
      %v208 = vmul.f32 %v206, %v188
      %v209 = vadd.f32 %v207, %v208
      %210 = vadd.xlane.f32.xlu0 %v209
      %v211 = vpop.xlane.xlu0 %210
      %v212 = vrot.slane %v211, 4
      %v213 = vadd.f32 %v211, %v212
      %v214 = vrot.slane %v213, 2
      %v215 = vadd.f32 %v213, %v214
      %v216 = vrot.slane %v215, 1
      %v217 = vadd.f32 %v215, %v216
      %s218 = vtos %v217
      %v219 = vlaneseq
      %v220 = vshrl.u32 %v219, 7
      %v221 = vlaneseq
      %v222 = vand.u32 %v221, 127
      %vm223 = vcmp.eq.s32.totalorder %v220, 0
      %vm224 = vcmp.eq.s32.totalorder %v222, 0
      %vm225 = vmand %vm223, %vm224
      %v226 = vstv %s218
      %v227 = vsel %vm225, %v226, 0.0
      %228 = vst [vmem:[#allocation9] sm:$0xff] %v227
    $region33: #{tpu_custom_call.1} parent=1 // pred_fallthru
      _
    // Predicated region
    $region34: #{tpu_custom_call.1} parent=1 // pred_check
      _
    $region35: #{tpu_custom_call.1} parent=1 // pred_check_branch
      %230 = sbr.rel (0) target = $region37
    $region36: #{tpu_custom_call.1} parent=1 // pred_region
      %s232 = ssub.s32 128, 128
      %233 = vsyncadd [#allocation5], %s232
      %s235 = sshll.u32 [#allocation9], 4
      %s236 = int_to_ptr.vmem [resolvable:$true] %s235
      %238 = dma.vmem_to_hbm [thread:$0]  %s236, 128, %s3, [#allocation5]
    $region37: #{tpu_custom_call.1} parent=1 // pred_fallthru
      _
    // Predicated region
    $region38: #{tpu_custom_call.1} parent=1 // pred_check
      _
    $region39: #{tpu_custom_call.1} parent=1 // pred_check_branch
      %240 = sbr.rel (0) target = $region41
    $region40: #{tpu_custom_call.1} parent=1 // pred_region
      %241 = dma.done [#allocation5], 128
    $region41: #{tpu_custom_call.1} parent=1 // pred_fallthru
      _
    %242 = vsyncpa [#allocation4], 1
    %243 = vsyncpa [#allocation7], 1
    %244 = vsyncpa [#allocation5], 1

</llo_original>
